<compile_context>
chip_gen: v7x
topology: tpu7x:2x2x1
jax: 0.10.0
libtpu: 0.0.40
codegen_flags: <defaults>
</compile_context>

<pallas_src>
import math
from functools import partial

import jax
import jax.numpy as jnp
from jax.experimental import pallas as pl
from jax.experimental.pallas import tpu as pltpu


# ------------------------------ small helpers --------------------------------

def _round_up(x, m):
    return ((x + m - 1) // m) * m


def _pick_tile(n, multiple, target):
    """Largest divisor of n that is a multiple of `multiple` and <= max(target, multiple)."""
    best = None
    t = multiple
    cap = min(n, max(target, multiple))
    while t <= cap:
        if n % t == 0:
            best = t
        t += multiple
    return best


def _vmem_cap_bytes():
    """5/8 of the chip's VMEM (leaves headroom for Mosaic internal scratch)."""
    try:
        cap = pltpu.get_tpu_info().vmem_capacity_bytes
    except Exception:
        cap = 64 * 1024 * 1024          # conservative (v7x-sized) fallback
    return int(cap) * 5 // 8


# --------------------------- fused QKV projection -----------------------------

def _qkv_kernel(x_ref, w_ref, b_ref, q_ref, k_ref, v_ref):
    E = q_ref.shape[-1]
    x = x_ref[...].astype(w_ref.dtype)                       # bf16 for the MXU
    acc = jnp.dot(x, w_ref[...], preferred_element_type=jnp.float32)
    acc = acc + b_ref[...]                                   # bias added in f32
    q_ref[...] = acc[:, :E].astype(q_ref.dtype)
    k_ref[...] = acc[:, E:2 * E].astype(k_ref.dtype)
    v_ref[...] = acc[:, 2 * E:].astype(v_ref.dtype)


def qkv_projection_pallas(x, w_qkv, b_qkv, *, out_dtype, row_tile=256):
    """x: (N, E), w_qkv: (E, 3E) bf16, b_qkv: (1, 3E) f32 -> q, k, v each (N, E)."""
    N, E = x.shape
    sub = 16 if out_dtype == jnp.bfloat16 else 8
    tn = _pick_tile(N, sub, row_tile)
    if tn is None:
        tn = N
    grid = (N // tn,)

    x_spec = pl.BlockSpec((tn, E), lambda i: (i, 0))
    w_spec = pl.BlockSpec((E, 3 * E), lambda i: (0, 0))      # resident across steps
    b_spec = pl.BlockSpec((1, 3 * E), lambda i: (0, 0))
    o_spec = pl.BlockSpec((tn, E), lambda i: (i, 0))

    x_b = jnp.dtype(x.dtype).itemsize
    w_b = jnp.dtype(w_qkv.dtype).itemsize
    o_b = jnp.dtype(out_dtype).itemsize

    # TODO(synk): for very large hidden sizes the resident (E, 3E) weight should be
    # tiled along the 3E axis; fine for the hidden sizes this module is used with.
    est = (2 * tn * E * x_b                # x block, double-buffered
           + E * 3 * E * w_b + 3 * E * 4   # resident weights + bias
           + tn * 3 * E * 4                # f32 accumulator
           + 3 * 2 * tn * E * o_b)         # q/k/v blocks, double-buffered
    vmem_limit = min(max(2 * est, 16 * 1024 * 1024), _vmem_cap_bytes())

    flops = 2 * N * E * 3 * E
    bytes_accessed = N * E * x_b + 3 * E * E * w_b + 3 * E * 4 + 3 * N * E * o_b

    out_sds = jax.ShapeDtypeStruct((N, E), out_dtype)
    q, k, v = pl.pallas_call(
        _qkv_kernel,
        out_shape=(out_sds, out_sds, out_sds),
        grid=grid,
        in_specs=[x_spec, w_spec, b_spec],
        out_specs=(o_spec, o_spec, o_spec),
        compiler_params=pltpu.CompilerParams(
            dimension_semantics=("parallel",),
            vmem_limit_bytes=int(vmem_limit)),
        cost_estimate=pl.CostEstimate(flops=int(flops), transcendentals=0,
                                      bytes_accessed=int(bytes_accessed)),
    )(x, w_qkv, b_qkv)
    return q, k, v


# --------------------------- block-banded attention ---------------------------

def _banded_attn_kernel(q_ref, k_hbm, v_hbm, o_ref, k_slab, v_slab, dma_sem, *,
                        window, halo, slab, tq, seq_len, n_heads, head_dim, nq):
    b = pl.program_id(0)
    qi = pl.program_id(1)

    def slab_start(q_idx):
        # Key slab covers [start, start+slab); clamped so it is always in-sequence
        # and (with halo >= window) always contains every in-band key.
        return jnp.clip(q_idx * tq - halo, 0, seq_len - slab)

    def kv_copies(q_idx, slot):
        st = slab_start(q_idx)
        kcp = pltpu.make_async_copy(k_hbm.at[b, pl.ds(st, slab), :],
                                    k_slab.at[slot], dma_sem.at[0, slot])
        vcp = pltpu.make_async_copy(v_hbm.at[b, pl.ds(st, slab), :],
                                    v_slab.at[slot], dma_sem.at[1, slot])
        return kcp, vcp

    slot = qi & 1

    # Prime the K/V pipeline at the first query tile of each batch.
    @pl.when(qi == 0)
    def _prime():
        for cp in kv_copies(0, 0):
            cp.start()

    # Prefetch the next query tile's K/V slab into the other buffer; it is waited
    # on at step qi+1, so the DMA hides under this step's compute.
    @pl.when(qi + 1 < nq)
    def _prefetch():
        for cp in kv_copies(qi + 1, (qi + 1) & 1):
            cp.start()

    # Mask / scalar work before the DMA wait (keeps it off the wait's shadow).
    off = qi * tq - slab_start(qi)                       # local offset of query row 0
    i_idx = jax.lax.broadcasted_iota(jnp.int32, (tq, slab), 0)
    j_idx = jax.lax.broadcasted_iota(jnp.int32, (tq, slab), 1)
    valid = jnp.abs(i_idx + off - j_idx) <= window       # band mask, shared by heads
    neg = jnp.float32(-1e30)                             # finite: diagonal always kept

    for cp in kv_copies(qi, slot):
        cp.wait()

    q_view = q_ref.at[0]
    o_view = o_ref.at[0]
    k_view = k_slab.at[slot]
    v_view = v_slab.at[slot]
    for h in range(n_heads):
        lo = h * head_dim
        qh = q_view[:, lo:lo + head_dim]                 # (tq, hd)   bf16/f32
        kh = k_view[:, lo:lo + head_dim]                 # (slab, hd)
        vh = v_view[:, lo:lo + head_dim]
        # scores = qh @ kh^T (contract last dims, no materialized transpose)
        s = jax.lax.dot_general(qh, kh, (((1,), (1,)), ((), ())),
                                preferred_element_type=jnp.float32)   # (tq, slab) f32
        s = jnp.where(valid, s, neg)
        m = jnp.max(s, axis=-1, keepdims=True)
        p = jnp.exp(s - m)
        denom = jnp.sum(p, axis=-1, keepdims=True)
        p = (p * pl.reciprocal(denom, approx=True)).astype(vh.dtype)  # EUP recip
        # TODO(synk): attention dropout omitted (attention_probs_dropout_prob=0.0).
        o_view[:, lo:lo + head_dim] = jnp.dot(
            p, vh, preferred_element_type=jnp.float32).astype(o_ref.dtype)


def banded_attention_pallas(q, k, v, *, window, n_heads, q_tile=256):
    """q, k, v: (B, S, E) with heads packed along E -> (B, S, E) float32."""
    B, S, E = q.shape
    head_dim = E // n_heads
    kv_dtype = q.dtype
    kv_b = jnp.dtype(kv_dtype).itemsize
    sub = 16 if kv_dtype == jnp.bfloat16 else 8

    halo = _round_up(window, sub)
    target = min(max(q_tile, 2 * halo), 512)             # keep DMA amplification <= ~2x
    tq = _pick_tile(S, sub, target)
    if tq is None:
        tq = S
    nq = S // tq
    slab = min(S, tq + 2 * halo)

    kern = partial(_banded_attn_kernel, window=window, halo=halo, slab=slab,
                   tq=tq, seq_len=S, n_heads=n_heads, head_dim=head_dim, nq=nq)

    est = (2 * tq * E * kv_b              # q blocks, double-buffered
           + 2 * tq * E * 4               # o blocks (f32), double-buffered
           + 2 * 2 * slab * E * kv_b      # K/V slabs, 2 slots each
           + 4 * tq * slab * 4)           # score/prob temporaries + headroom
    vmem_limit = min(max(2 * est, 16 * 1024 * 1024), _vmem_cap_bytes())

    flops = 4 * B * S * slab * E                          # QK^T + PV over the slab
    transcendentals = B * S * slab * n_heads              # exp
    bytes_accessed = (B * S * E * kv_b                    # q
                      + 2 * B * nq * slab * E * kv_b      # k + v halo slabs
                      + B * S * E * 4)                    # output (f32)

    q_spec = pl.BlockSpec((1, tq, E), lambda b, i: (b, i, 0))
    o_spec = pl.BlockSpec((1, tq, E), lambda b, i: (b, i, 0))
    hbm = pl.BlockSpec(memory_space=pl.ANY)

    # TODO(synk): for B == 1 on v7x, split the query range across the two
    # TensorCores (core_map / leading grid axis of 2) instead of batch-parallel.
    return pl.pallas_call(
        kern,
        out_shape=jax.ShapeDtypeStruct((B, S, E), jnp.float32),
        grid=(B, nq),
        in_specs=[q_spec, hbm, hbm],
        out_specs=o_spec,
        scratch_shapes=[pltpu.VMEM((2, slab, E), kv_dtype),
                        pltpu.VMEM((2, slab, E), kv_dtype),
                        pltpu.SemaphoreType.DMA((2, 2))],
        compiler_params=pltpu.CompilerParams(
            dimension_semantics=("parallel", "arbitrary"),
            vmem_limit_bytes=int(vmem_limit)),
        cost_estimate=pl.CostEstimate(flops=int(flops),
                                      transcendentals=int(transcendentals),
                                      bytes_accessed=int(bytes_accessed)),
    )(q, k, v)


# --------------------------- Module wrapper ----------------------------------

def init_longformer_params(key, hidden_size):
    """Deterministic parameter init (shapes match nn.Linear(hidden, hidden))."""
    keys = jax.random.split(key, 12)

    def lin(kw, kb):
        w = jax.random.normal(kw, (hidden_size, hidden_size), jnp.float32) * 0.02
        b = jax.random.normal(kb, (1, hidden_size), jnp.float32) * 0.02
        return w, b

    p = {}
    for i, name in enumerate(["query", "key", "value",
                              "query_global", "key_global", "value_global"]):
        w, b = lin(keys[2 * i], keys[2 * i + 1])
        p[name + "_w"] = w       # stored as (in, out) == torch weight.T
        p[name + "_b"] = b
    return p  # *_global params exist in __init__ but are unused by this forward


def longformer_self_attention_forward(x, params, *, num_heads, attention_window):
    """x: (bsz, seq_len, hidden) -> context_layer: (bsz, seq_len, hidden)."""
    B, S, E = x.shape
    assert E % num_heads == 0
    assert attention_window > 0
    # sliding_chunks requires seq_len to be a multiple of 2 * window
    assert S % (2 * attention_window) == 0
    head_dim = E // num_heads
    scale = 1.0 / math.sqrt(head_dim)

    # bf16 q/k/v storage when S supports 16-row (bf16 sublane) tiles; else f32.
    kv_dtype = jnp.bfloat16 if S % 16 == 0 else jnp.float32

    # Fuse q/k/v weights into one (E, 3E) matrix and fold 1/sqrt(head_dim) into
    # the query projection so the attention kernel never rescales q.
    w_qkv = jnp.concatenate([params["query_w"] * scale, params["key_w"],
                             params["value_w"]], axis=1).astype(jnp.bfloat16)
    b_qkv = jnp.concatenate([params["query_b"] * scale, params["key_b"],
                             params["value_b"]], axis=1).astype(jnp.float32)

    q, k, v = qkv_projection_pallas(x.reshape(B * S, E), w_qkv, b_qkv,
                                    out_dtype=kv_dtype)

    # Keep (B, S, E) layout — heads are sliced along the lane axis in-kernel,
    # so there are no (B,S,H,hd)<->(B,H,S,hd) HBM transposes anywhere.
    q = q.reshape(B, S, E)
    k = k.reshape(B, S, E)
    v = v.reshape(B, S, E)

    return banded_attention_pallas(q, k, v, window=attention_window,
                                   n_heads=num_heads)


# --------------------------- Reference (plain JAX) ---------------------------

def _reference_forward(x, params, *, num_heads, attention_window):
    B, S, E = x.shape
    hd = E // num_heads
    q = x @ params["query_w"] + params["query_b"]
    k = x @ params["key_w"] + params["key_b"]
    v = x @ params["value_w"] + params["value_b"]
    q = q.reshape(B, S, num_heads, hd).transpose(0, 2, 1, 3) / math.sqrt(hd)
    k = k.reshape(B, S, num_heads, hd).transpose(0, 2, 1, 3)
    v = v.reshape(B, S, num_heads, hd).transpose(0, 2, 1, 3)
    s = jnp.einsum("bhqd,bhkd->bhqk", q, k)
    i = jnp.arange(S)[:, None]
    j = jnp.arange(S)[None, :]
    band = (j >= i - attention_window) & (j <= i + attention_window)
    s = jnp.where(band[None, None], s, -jnp.inf)
    p = jax.nn.softmax(s, axis=-1)
    o = jnp.einsum("bhqk,bhkd->bhqd", p, v)
    return o.transpose(0, 2, 1, 3).reshape(B, S, E)


# --------------------------------- Main ---------------------------------------

if __name__ == "__main__":
    # Module config: layer_id=0, num_attention_heads=4, hidden_size=32,
    # attention_probs_dropout_prob=0.0, attention_window=[4],
    # attention_mode='sliding_chunks', attention_dilation=[1]
    num_heads = 4
    hidden_size = 32
    attention_window = 4
    bsz, seq_len = 2, 16

    key = jax.random.PRNGKey(0)
    k_param, k_x = jax.random.split(key)
    params = init_longformer_params(k_param, hidden_size)
    x = jax.random.normal(k_x, (bsz, seq_len, hidden_size), jnp.float32)

    out = longformer_self_attention_forward(
        x, params, num_heads=num_heads, attention_window=attention_window)
    out = jax.block_until_ready(out)

    ref = _reference_forward(
        x, params, num_heads=num_heads, attention_window=attention_window)
    assert out.shape == (bsz, seq_len, hidden_size)
    # Tolerance reflects the bf16 MXU path (bf16 q/k/v storage and matmul operands;
    # softmax math stays f32) plus the EUP approximate reciprocal.
    assert jnp.allclose(out, ref, atol=1e-2, rtol=1e-2), (
        float(jnp.max(jnp.abs(out - ref))))

    print("KERNEL_OK")
</pallas_src>

<mosaic_0001>
module attributes {stable_mosaic.version = 11 : i64} {
  func.func @_qkv_kernel(%arg0: i32, %arg1: memref<32x32xf32, #tpu.memory_space<vmem>>, %arg2: memref<32x96xbf16, #tpu.memory_space<vmem>>, %arg3: memref<1x96xf32, #tpu.memory_space<vmem>>, %arg4: memref<32x32xbf16, #tpu.memory_space<vmem>>, %arg5: memref<32x32xbf16, #tpu.memory_space<vmem>>, %arg6: memref<32x32xbf16, #tpu.memory_space<vmem>>) attributes {dimension_semantics = [#tpu.dimension_semantics<parallel>], iteration_bounds = array<i64: 1>, scalar_prefetch = 0 : i64, scratch_operands = 0 : i64, tpu.core_type = #tpu.core_type<tc>, window_params = [{transform_indices = @transform_0, window_bounds = array<i64: 32, 32>}, {pipeline_mode = #tpu.pipeline_mode<synchronous>, transform_indices = @transform_1, window_bounds = array<i64: 32, 96>}, {pipeline_mode = #tpu.pipeline_mode<synchronous>, transform_indices = @transform_2, window_bounds = array<i64: 1, 96>}, {transform_indices = @transform_3, window_bounds = array<i64: 32, 32>}, {transform_indices = @transform_4, window_bounds = array<i64: 32, 32>}, {transform_indices = @transform_5, window_bounds = array<i64: 32, 32>}]} {
    %c0 = arith.constant 0 : index
    %c0_0 = arith.constant 0 : index
    %0 = vector.load %arg1[%c0, %c0_0] : memref<32x32xf32, #tpu.memory_space<vmem>>, vector<32x32xf32>
    %1 = arith.truncf %0 : vector<32x32xf32> to vector<32x32xbf16>
    %c0_1 = arith.constant 0 : index
    %c0_2 = arith.constant 0 : index
    %2 = vector.load %arg2[%c0_1, %c0_2] : memref<32x96xbf16, #tpu.memory_space<vmem>>, vector<32x96xbf16>
    %cst = arith.constant dense<0.000000e+00> : vector<32x96xf32>
    %3 = tpu.matmul %1, %2, %cst {dimension_numbers = #tpu.dot_dimension_numbers<[1], [0], [0], [1], [0, 0, 1, 1], [], []>} : vector<32x32xbf16>, vector<32x96xbf16>, vector<32x96xf32> -> vector<32x96xf32>
    %c0_3 = arith.constant 0 : index
    %c0_4 = arith.constant 0 : index
    %4 = vector.load %arg3[%c0_3, %c0_4] : memref<1x96xf32, #tpu.memory_space<vmem>>, vector<1x96xf32>
    %5 = vector.broadcast %4 : vector<1x96xf32> to vector<32x96xf32>
    %6 = arith.addf %3, %5 : vector<32x96xf32>
    %7 = vector.extract_strided_slice %6 {offsets = [0, 0], sizes = [32, 32], strides = [1, 1]} : vector<32x96xf32> to vector<32x32xf32>
    %8 = arith.truncf %7 : vector<32x32xf32> to vector<32x32xbf16>
    %c0_5 = arith.constant 0 : index
    %c0_6 = arith.constant 0 : index
    %9 = vector.load %arg4[%c0_5, %c0_6] : memref<32x32xbf16, #tpu.memory_space<vmem>>, vector<32x32xbf16>
    tpu.vector_store %arg4[%c0_5, %c0_6], %8 {strides = array<i32>} : memref<32x32xbf16, #tpu.memory_space<vmem>>, vector<32x32xbf16>,
    %10 = vector.extract_strided_slice %6 {offsets = [0, 32], sizes = [32, 32], strides = [1, 1]} : vector<32x96xf32> to vector<32x32xf32>
    %11 = arith.truncf %10 : vector<32x32xf32> to vector<32x32xbf16>
    %c0_7 = arith.constant 0 : index
    %c0_8 = arith.constant 0 : index
    %12 = vector.load %arg5[%c0_7, %c0_8] : memref<32x32xbf16, #tpu.memory_space<vmem>>, vector<32x32xbf16>
    tpu.vector_store %arg5[%c0_7, %c0_8], %11 {strides = array<i32>} : memref<32x32xbf16, #tpu.memory_space<vmem>>, vector<32x32xbf16>,
    %13 = vector.extract_strided_slice %6 {offsets = [0, 64], sizes = [32, 32], strides = [1, 1]} : vector<32x96xf32> to vector<32x32xf32>
    %14 = arith.truncf %13 : vector<32x32xf32> to vector<32x32xbf16>
    %c0_9 = arith.constant 0 : index
    %c0_10 = arith.constant 0 : index
    %15 = vector.load %arg6[%c0_9, %c0_10] : memref<32x32xbf16, #tpu.memory_space<vmem>>, vector<32x32xbf16>
    tpu.vector_store %arg6[%c0_9, %c0_10], %14 {strides = array<i32>} : memref<32x32xbf16, #tpu.memory_space<vmem>>, vector<32x32xbf16>,
    return
  }
  func.func @transform_0(%arg0: i32) -> (i32, i32) {
    %c0_i32 = arith.constant 0 : i32
    %c0_i32_0 = arith.constant 0 : i32
    return %arg0, %c0_i32 : i32, i32
  }
  func.func @transform_1(%arg0: i32) -> (i32, i32) {
    %c0_i32 = arith.constant 0 : i32
    %c0_i32_0 = arith.constant 0 : i32
    %c0_i32_1 = arith.constant 0 : i32
    return %c0_i32, %c0_i32_0 : i32, i32
  }
  func.func @transform_2(%arg0: i32) -> (i32, i32) {
    %c0_i32 = arith.constant 0 : i32
    %c0_i32_0 = arith.constant 0 : i32
    %c0_i32_1 = arith.constant 0 : i32
    return %c0_i32, %c0_i32_0 : i32, i32
  }
  func.func @transform_3(%arg0: i32) -> (i32, i32) {
    %c0_i32 = arith.constant 0 : i32
    %c0_i32_0 = arith.constant 0 : i32
    return %arg0, %c0_i32 : i32, i32
  }
  func.func @transform_4(%arg0: i32) -> (i32, i32) {
    %c0_i32 = arith.constant 0 : i32
    %c0_i32_0 = arith.constant 0 : i32
    return %arg0, %c0_i32 : i32, i32
  }
  func.func @transform_5(%arg0: i32) -> (i32, i32) {
    %c0_i32 = arith.constant 0 : i32
    %c0_i32_0 = arith.constant 0 : i32
    return %arg0, %c0_i32 : i32, i32
  }
}

</mosaic_0001>

<llo_original>
// kernel: tpu_custom_call.1
$region0: #{tpu_custom_call.1}
  #allocation0 [shape = 'u32[]', space=smem, size = 0x4, offset = 0x4, fixed_abs, tag = 'smem constant byte address 0x4 - core index']
  #allocation1 [shape = 'u32[144,128]{1,0:T(1,128)}', space=vmem, size = 0x12000, scoped, tag = 'internal scratch']
  %s0 = inlined_call_operand.hbm [shape: f32[32,32], index: 0, kind: input, shape index: {}]
  %s1 = inlined_call_operand.hbm [shape: bf16[32,96], index: 1, kind: input, shape index: {}]
  %s2 = inlined_call_operand.vmem [shape: f32[1,96], index: 2, kind: input, shape index: {}]
  %s3 = inlined_call_operand.hbm [shape: bf16[32,32], index: 3, kind: output, shape index: {0}]
  %s4 = inlined_call_operand.hbm [shape: bf16[32,32], index: 4, kind: output, shape index: {1}]
  %s5 = inlined_call_operand.hbm [shape: bf16[32,32], index: 5, kind: output, shape index: {2}]
  %6 = xla_tuple %s3, %s4, %s5
  %s7 = sld [smem:[#allocation0]]
  $region46: #{tpu_custom_call.1} parent=0
    _
  %s9 = ssub.s32 1, %s7
  %s10 = scalar_select 0, %s9, %s7
  $region1: #{tpu_custom_call.1} parent=0
    #allocation2 [shape = 'u8[16384]{0}', space=vmem, size = 0x4000, scoped, tag = 'input window, operand 0, single buffered']
    #allocation3 [shape = 's32[1]{0}', space=sflag, size = 0x4, scoped, tag = 'scoped memory for tpu_custom_call.1']
    #allocation4 [shape = 's32[1]{0}', space=sflag, size = 0x4, scoped, tag = 'scoped memory for tpu_custom_call.1']
    #allocation5 [shape = 'u8[8192]{0}', space=vmem, size = 0x2000, scoped, tag = 'input window, operand 1, single buffered']
    #allocation6 [shape = 's32[1]{0}', space=sflag, size = 0x4, scoped, tag = 'scoped memory for tpu_custom_call.1']
    #allocation7 [shape = 'u8[8192]{0}', space=vmem, size = 0x2000, scoped, tag = 'output window, operand 0, single buffered']
    #allocation8 [shape = 'u8[8192]{0}', space=vmem, size = 0x2000, scoped, tag = 'output window, operand 1, single buffered']
    #allocation9 [shape = 's32[1]{0}', space=sflag, size = 0x4, scoped, tag = 'scoped memory for tpu_custom_call.1']
    #allocation10 [shape = 'u8[8192]{0}', space=vmem, size = 0x2000, scoped, tag = 'output window, operand 2, single buffered']
    %11 = vsyncpa [#allocation3], 0
    %12 = vsyncpa [#allocation6], 0
    %13 = vsyncpa [#allocation4], 0
    %14 = vsyncpa [#allocation9], 0
    // Predicated region
    $region2: #{tpu_custom_call.1} parent=1 // pred_check
      _
    $region3: #{tpu_custom_call.1} parent=1 // pred_check_branch
      %16 = sbr.rel (0) target = $region5
    $region4: #{tpu_custom_call.1} parent=1 // pred_region
      %s18 = ssub.s32 512, 512
      %19 = vsyncadd [#allocation3], %s18
      %s20 = sshll.u32 [#allocation2], 4
      %s21 = int_to_ptr.vmem [resolvable:$true] %s20
      %26 = dma.hbm_to_vmem [thread:$0]  %s0, 512, %s21, [#allocation3], 128, 128, 8
    $region5: #{tpu_custom_call.1} parent=1 // pred_fallthru
      _
    // Predicated region
    $region6: #{tpu_custom_call.1} parent=1 // pred_check
      _
    $region7: #{tpu_custom_call.1} parent=1 // pred_check_branch
      %28 = sbr.rel (0) target = $region9
    $region8: #{tpu_custom_call.1} parent=1 // pred_region
      %s30 = ssub.s32 256, 256
      %31 = vsyncadd [#allocation6], %s30
      %s32 = sshll.u32 [#allocation5], 4
      %s33 = int_to_ptr.vmem [resolvable:$true] %s32
      %38 = dma.hbm_to_vmem [thread:$0]  %s1, 256, %s33, [#allocation6], 64, 64, 4
    $region9: #{tpu_custom_call.1} parent=1 // pred_fallthru
      _
    // Predicated region
    $region10: #{tpu_custom_call.1} parent=1 // pred_check
      _
    $region11: #{tpu_custom_call.1} parent=1 // pred_check_branch
      %40 = sbr.rel (0) target = $region13
    $region12: #{tpu_custom_call.1} parent=1 // pred_region
      _
    $region13: #{tpu_custom_call.1} parent=1 // pred_fallthru
      _
    // Predicated region
    $region14: #{tpu_custom_call.1} parent=1 // pred_check
      _
    $region15: #{tpu_custom_call.1} parent=1 // pred_check_branch
      %42 = sbr.rel (0) target = $region17
    $region16: #{tpu_custom_call.1} parent=1 // pred_region
      %43 = dma.done [#allocation3], 512
    $region17: #{tpu_custom_call.1} parent=1 // pred_fallthru
      _
    // Predicated region
    $region18: #{tpu_custom_call.1} parent=1 // pred_check
      _
    $region19: #{tpu_custom_call.1} parent=1 // pred_check_branch
      %45 = sbr.rel (0) target = $region21
    $region20: #{tpu_custom_call.1} parent=1 // pred_region
      %46 = dma.done [#allocation6], 256
    $region21: #{tpu_custom_call.1} parent=1 // pred_fallthru
      _
    %v48 = vld [vmem:[#allocation2] sm:$0xff]
    %v49 = vld [vmem:[#allocation2 + $0x8] sm:$0xff]
    %v50 = vld [vmem:[#allocation2 + $0x10] sm:$0xff]
    %v51 = vld [vmem:[#allocation2 + $0x18] sm:$0xff]
    %v52 = vpack.c.bf16 %v49, %v48
    %v53 = vpack.c.bf16 %v51, %v50
    %v54 = vld [vmem:[#allocation5] sm:$0xf]
    %v55 = vld [vmem:[#allocation5 + $0x4] sm:$0xf]
    %v56 = vld [vmem:[#allocation5 + $0x8] sm:$0xf]
    %v57 = vld [vmem:[#allocation5 + $0xc] sm:$0xf]
    %v58 = vld [vmem:[%s2] sm:$0x1]
    %v60 = vlaneseq
    %v61 = vshrl.u32 %v60, 7
    %v62 = vsub.s32 0, %v61
    %v63 = vrot.slane %v58, %v62
    %v69 = vunpack.c.l.b16 %v54
    %v70 = vunpack.c.l.b16 %v55
    %v71 = vunpack.c.l.b16 %v56
    %v72 = vunpack.c.l.b16 %v57
    %v73 = vpack.c.b16 %v70, %v69
    %v74 = vpack.c.b16 %v72, %v71
    %vm77 = vcmask 261120
    %v79 = vsel %vm77, %v52, 0
    %v82 = vsel %vm77, %v53, 0
    %84 = vmatprep.subr.bf16.mxu0 0
    %85 = vmatpush1.bf16.msra.mxu0 %v73
    %86 = vmatprep.subr.bf16.mxu0 0
    %87 = vmatpush1.bf16.msra.mxu0 %v74
    %88 = vmatprep.subr.bf16.mxu0 0
    %89 = vmatpush1.bf16.msra.mxu0 0
    %90 = vmatprep.subr.bf16.mxu0 0
    %91 = vmatpush1.bf16.msra.mxu0 0
    %92 = vmatprep.subr.bf16.mxu0 0
    %93 = vmatpush1.bf16.msra.mxu0 0
    %94 = vmatprep.subr.bf16.mxu0 0
    %95 = vmatpush1.bf16.msra.mxu0 0
    %96 = vmatprep.subr.bf16.mxu0 0
    %97 = vmatpush1.bf16.msra.mxu0 0
    %98 = vmatprep.subr.bf16.mxu0 0
    %99 = vmatpush1.bf16.msra.mxu0 0
    %100 = vmatprep.subr.bf16.mxu0 0
    %101 = vmatpush1.bf16.msra.mxu0 0
    %102 = vmatprep.subr.bf16.mxu0 0
    %103 = vmatpush1.bf16.msra.mxu0 0
    %104 = vmatprep.subr.bf16.mxu0 0
    %105 = vmatpush1.bf16.msra.mxu0 0
    %106 = vmatprep.subr.bf16.mxu0 0
    %107 = vmatpush1.bf16.msra.mxu0 0
    %108 = vmatprep.subr.bf16.mxu0 0
    %109 = vmatpush1.bf16.msra.mxu0 0
    %110 = vmatprep.subr.bf16.mxu0 0
    %111 = vmatpush1.bf16.msra.mxu0 0
    %112 = vmatprep.subr.bf16.mxu0 0
    %113 = vmatpush1.bf16.msra.mxu0 0
    %114 = vmatprep.subr.bf16.mxu0 0
    %115 = vmatpush1.bf16.msra.mxu0 0
    %116 = vmatprep.mubr.bf16.mxu0 0
    %117 = vmatmul.mubr.bf16.gmra.mrb[0].mxu0 %v79
    %v118 = vpop.f32.mrb[0].mxu0
    %v119 = vadd.f32 %v63, %v118
    %v120 = vpop.f32.mrb[0].mxu0
    %v121 = vpop.f32.mrb[0].mxu0
    %v122 = vadd.f32 %v63, %v121
    %v123 = vpop.f32.mrb[0].mxu0
    %124 = vmatprep.mubr.bf16.mxu0 0
    %125 = vmatmul.mubr.bf16.gmra.mrb[0].mxu0 %v82
    %v126 = vpop.f32.mrb[0].mxu0
    %v127 = vadd.f32 %v63, %v126
    %v128 = vpop.f32.mrb[0].mxu0
    %v129 = vpop.f32.mrb[0].mxu0
    %v130 = vadd.f32 %v63, %v129
    %v131 = vpop.f32.mrb[0].mxu0
    %132 = vdwg.mxu0
    %v133 = vpack.c.bf16 %v122, %v119
    %v134 = vpack.c.bf16 %v130, %v127
    %v137 = vunpack.c.l.b16 %v133
    %v138 = vunpack.c.h.b16 %v133
    %v139 = vunpack.c.l.b16 %v134
    %v140 = vunpack.c.h.b16 %v134
    %v141 = vpack.c.b16 %v137, %v137
    %v142 = vpack.c.b16 %v138, %v138
    %v143 = vpack.c.b16 %v139, %v139
    %v144 = vpack.c.b16 %v140, %v140
    %vm149 = vcmask 257024
    %150 = vst.msk [vmem:[#allocation7] sm:$0xf] %vm149, %v141
    %151 = vst.msk [vmem:[#allocation7 + $0x4] sm:$0xf] %vm149, %v142
    %152 = vst.msk [vmem:[#allocation7 + $0x8] sm:$0xf] %vm149, %v143
    %153 = vst.msk [vmem:[#allocation7 + $0xc] sm:$0xf] %vm149, %v144
    %154 = vrot.lane.b32.xlu0 %v141, 96
    %v155 = vpop.permute.xlu0 %154
    %156 = vrot.lane.b32.xlu0 %v142, 96
    %v157 = vpop.permute.xlu0 %156
    %158 = vrot.lane.b32.xlu0 %v143, 96
    %v159 = vpop.permute.xlu0 %158
    %160 = vrot.lane.b32.xlu0 %v144, 96
    %v161 = vpop.permute.xlu0 %160
    %166 = vst.msk [vmem:[#allocation8] sm:$0xf] %vm149, %v155
    %167 = vst.msk [vmem:[#allocation8 + $0x4] sm:$0xf] %vm149, %v157
    %168 = vst.msk [vmem:[#allocation8 + $0x8] sm:$0xf] %vm149, %v159
    %169 = vst.msk [vmem:[#allocation8 + $0xc] sm:$0xf] %vm149, %v161
    %170 = vrot.lane.b32.xlu0 %v141, 64
    %v171 = vpop.permute.xlu0 %170
    %172 = vrot.lane.b32.xlu0 %v142, 64
    %v173 = vpop.permute.xlu0 %172
    %174 = vrot.lane.b32.xlu0 %v143, 64
    %v175 = vpop.permute.xlu0 %174
    %176 = vrot.lane.b32.xlu0 %v144, 64
    %v177 = vpop.permute.xlu0 %176
    %182 = vst.msk [vmem:[#allocation10] sm:$0xf] %vm149, %v171
    %183 = vst.msk [vmem:[#allocation10 + $0x4] sm:$0xf] %vm149, %v173
    %184 = vst.msk [vmem:[#allocation10 + $0x8] sm:$0xf] %vm149, %v175
    %185 = vst.msk [vmem:[#allocation10 + $0xc] sm:$0xf] %vm149, %v177
    // Predicated region
    $region22: #{tpu_custom_call.1} parent=1 // pred_check
      _
    $region23: #{tpu_custom_call.1} parent=1 // pred_check_branch
      %187 = sbr.rel (0) target = $region25
    $region24: #{tpu_custom_call.1} parent=1 // pred_region
      %s189 = ssub.s32 256, 256
      %190 = vsyncadd [#allocation4], %s189
      %s191 = sshll.u32 [#allocation7], 4
      %s192 = int_to_ptr.vmem [resolvable:$true] %s191
      %197 = dma.vmem_to_hbm [thread:$0]  %s192, 256, %s3, [#allocation4], 64, 64, 4
    $region25: #{tpu_custom_call.1} parent=1 // pred_fallthru
      _
    // Predicated region
    $region26: #{tpu_custom_call.1} parent=1 // pred_check
      _
    $region27: #{tpu_custom_call.1} parent=1 // pred_check_branch
      %199 = sbr.rel (0) target = $region29
    $region28: #{tpu_custom_call.1} parent=1 // pred_region
      %s201 = ssub.s32 256, 256
      %202 = vsyncadd [#allocation9], %s201
      %s203 = sshll.u32 [#allocation8], 4
      %s204 = int_to_ptr.vmem [resolvable:$true] %s203
      %209 = dma.vmem_to_hbm [thread:$0]  %s204, 256, %s4, [#allocation9], 64, 64, 4
    $region29: #{tpu_custom_call.1} parent=1 // pred_fallthru
      _
    // Predicated region
    $region30: #{tpu_custom_call.1} parent=1 // pred_check
      _
    $region31: #{tpu_custom_call.1} parent=1 // pred_check_branch
      %211 = sbr.rel (0) target = $region33
    $region32: #{tpu_custom_call.1} parent=1 // pred_region
      %s213 = ssub.s32 256, 256
      %214 = vsyncadd [#allocation9], %s213
      %s215 = sshll.u32 [#allocation10], 4
      %s216 = int_to_ptr.vmem [resolvable:$true] %s215
      %221 = dma.vmem_to_hbm [thread:$0]  %s216, 256, %s5, [#allocation9], 64, 64, 4
    $region33: #{tpu_custom_call.1} parent=1 // pred_fallthru
      _
    // Predicated region
    $region34: #{tpu_custom_call.1} parent=1 // pred_check
      _
    $region35: #{tpu_custom_call.1} parent=1 // pred_check_branch
      %223 = sbr.rel (0) target = $region37
    $region36: #{tpu_custom_call.1} parent=1 // pred_region
      %224 = dma.done [#allocation4], 256
    $region37: #{tpu_custom_call.1} parent=1 // pred_fallthru
      _
    // Predicated region
    $region38: #{tpu_custom_call.1} parent=1 // pred_check
      _
    $region39: #{tpu_custom_call.1} parent=1 // pred_check_branch
      %226 = sbr.rel (0) target = $region41
    $region40: #{tpu_custom_call.1} parent=1 // pred_region
      %227 = dma.done [#allocation9], 256
    $region41: #{tpu_custom_call.1} parent=1 // pred_fallthru
      _
    // Predicated region
    $region42: #{tpu_custom_call.1} parent=1 // pred_check
      _
    $region43: #{tpu_custom_call.1} parent=1 // pred_check_branch
      %229 = sbr.rel (0) target = $region45
    $region44: #{tpu_custom_call.1} parent=1 // pred_region
      %230 = dma.done [#allocation9], 256
    $region45: #{tpu_custom_call.1} parent=1 // pred_fallthru
      _
    %231 = vsyncpa [#allocation3], 1
    %232 = vsyncpa [#allocation6], 1
    %233 = vsyncpa [#allocation4], 1
    %234 = vsyncpa [#allocation9], 1

</llo_original>
